<compile_context>
chip_gen: v7x
topology: tpu7x:2x2x1
jax: 0.10.0
libtpu: 0.0.40
codegen_flags: <defaults>
</compile_context>

<pallas_src>
import math

import jax
import jax.numpy as jnp
from jax.experimental import pallas as pl
from jax.experimental.pallas import tpu as pltpu


def _round_up(x, m):
    return ((x + m - 1) // m) * m


def _linear_kernel(x_ref, w_ref, b_ref, o_ref, acc_ref):
    """One (tm, tn) output tile; grid axis 2 is the K reduction."""
    k = pl.program_id(2)

    @pl.when(k == 0)
    def _init():
        # Fold the bias into the accumulator init: saves a VPU add + an extra
        # pass over the (tm, tn) tile in the epilogue.
        acc_ref[...] = jnp.broadcast_to(
            b_ref[...].astype(jnp.float32), acc_ref.shape
        )

    acc_ref[...] += jnp.dot(
        x_ref[...], w_ref[...], preferred_element_type=jnp.float32
    )

    @pl.when(k == pl.num_programs(2) - 1)
    def _store():
        o_ref[...] = acc_ref[...].astype(o_ref.dtype)


def classifier_forward(x, w_t, b, *, tm=None, tn=None, tk=None):
    """x: [B, in_size], w_t: [in_size, out_size], b: [1, out_size] -> [B, out_size]."""
    B, K = x.shape
    Kw, N = w_t.shape
    assert K == Kw, (K, Kw)

    # Tile sizes: sublane dims must be multiples of 8, lane dims multiples of
    # 128.  Capped at (256, 256, 512) f32 (~2.5 MiB live incl. double-buffer)
    # so the same tiles fit v5e/v6e (128 MiB VMEM) and v7x (64 MiB VMEM).
    if tm is None:
        tm = min(256, _round_up(B, 8))
    if tn is None:
        tn = min(256, _round_up(N, 128))
    if tk is None:
        tk = min(512, _round_up(K, 128))

    # Pad to tile multiples so every block is full-size and lane-dense.
    Bp, Kp, Np = _round_up(B, tm), _round_up(K, tk), _round_up(N, tn)
    xp = x if (Bp == B and Kp == K) else jnp.pad(x, ((0, Bp - B), (0, Kp - K)))
    wp = w_t if (Kp == K and Np == N) else jnp.pad(w_t, ((0, Kp - K), (0, Np - N)))
    bp = b.reshape(1, N)
    if Np != N:
        bp = jnp.pad(bp, ((0, 0), (0, Np - N)))

    grid = (Bp // tm, Np // tn, Kp // tk)

    flops = 2 * Bp * Kp * Np
    bytes_accessed = 4 * (Bp * Kp + Kp * Np + Bp * Np + Np)

    out = pl.pallas_call(
        _linear_kernel,
        out_shape=jax.ShapeDtypeStruct((Bp, Np), x.dtype),
        grid_spec=pltpu.PrefetchScalarGridSpec(
            num_scalar_prefetch=0,
            grid=grid,
            in_specs=[
                pl.BlockSpec((tm, tk), lambda i, j, k: (i, k)),   # x tile
                pl.BlockSpec((tk, tn), lambda i, j, k: (k, j)),   # w tile
                pl.BlockSpec((1, tn), lambda i, j, k: (0, j)),    # bias tile
            ],
            out_specs=pl.BlockSpec((tm, tn), lambda i, j, k: (i, j)),
            scratch_shapes=[pltpu.VMEM((tm, tn), jnp.float32)],
        ),
        compiler_params=pltpu.CompilerParams(
            dimension_semantics=("parallel", "parallel", "arbitrary"),
            vmem_limit_bytes=64 * 1024 * 1024,
        ),
        cost_estimate=pl.CostEstimate(
            flops=flops, transcendentals=0, bytes_accessed=bytes_accessed
        ),
    )(xp, wp, bp)

    if Bp != B or Np != N:
        out = out[:B, :N]
    return out


def init_classifier_params(key, in_size, out_size, dtype=jnp.float32):
    """Mimics init_weights for Linear: xavier_normal_ on weight, zeros on bias."""
    std = math.sqrt(2.0 / (in_size + out_size))
    # PyTorch weight shape is (out_size, in_size); we store the transpose so
    # the kernel hot path is a plain x @ W_T matmul.
    w = std * jax.random.normal(key, (out_size, in_size), dtype=dtype)
    w_t = jnp.transpose(w)                       # [in_size, out_size]
    b = jnp.zeros((1, out_size), dtype=dtype)    # bias, broadcast over batch
    return w_t, b


if __name__ == "__main__":
    key = jax.random.PRNGKey(0)
    k_x, k_w, k_x2, k_w2 = jax.random.split(key, 4)

    # Small case matching the module's intent (single grid point after padding).
    batch, in_size, out_size = 8, 32, 16
    x = jax.random.normal(k_x, (batch, in_size), dtype=jnp.float32)
    w_t, b = init_classifier_params(k_w, in_size, out_size)

    y = classifier_forward(x, w_t, b)
    jax.block_until_ready(y)
    y_ref = x @ w_t + b
    assert y.shape == (batch, out_size)
    assert jnp.allclose(y, y_ref, atol=1e-4, rtol=1e-4)

    # Ragged case exercising the real (tm, tn, tk) grid: 2 x 2 x 2 tiles.
    batch2, in2, out2 = 300, 640, 384
    x2 = jax.random.normal(k_x2, (batch2, in2), dtype=jnp.float32)
    w_t2, b2 = init_classifier_params(k_w2, in2, out2)
    b2 = b2 + 0.5  # nonzero bias so the bias path is actually checked

    y2 = classifier_forward(x2, w_t2, b2)
    jax.block_until_ready(y2)
    y2_ref = x2 @ w_t2 + b2
    assert y2.shape == (batch2, out2)
    assert jnp.allclose(y2, y2_ref, atol=1e-4, rtol=1e-4)

    print("KERNEL_OK")
</pallas_src>

<mosaic_0001>
module attributes {stable_mosaic.version = 11 : i64} {
  func.func @_linear_kernel(%arg0: i32, %arg1: i32, %arg2: i32, %arg3: memref<8x128xf32, #tpu.memory_space<vmem>>, %arg4: memref<128x128xf32, #tpu.memory_space<vmem>>, %arg5: memref<1x128xf32, #tpu.memory_space<vmem>>, %arg6: memref<8x128xf32, #tpu.memory_space<vmem>>, %arg7: memref<8x128xf32, #tpu.memory_space<vmem>>) attributes {dimension_semantics = [#tpu.dimension_semantics<parallel>, #tpu.dimension_semantics<parallel>, #tpu.dimension_semantics<arbitrary>], iteration_bounds = array<i64: 1, 1, 1>, scalar_prefetch = 0 : i64, scratch_operands = 1 : i64, tpu.core_type = #tpu.core_type<tc>, window_params = [{transform_indices = @transform_0, window_bounds = array<i64: 8, 128>}, {transform_indices = @transform_1, window_bounds = array<i64: 128, 128>}, {transform_indices = @transform_2, window_bounds = array<i64: 1, 128>}, {transform_indices = @transform_3, window_bounds = array<i64: 8, 128>}]} {
    %c0_i32 = arith.constant 0 : i32
    %0 = arith.cmpi eq, %arg2, %c0_i32 : i32
    %1 = arith.extui %0 : i1 to i32
    %c0_i32_0 = arith.constant 0 : i32
    %2 = arith.cmpi ne, %1, %c0_i32_0 : i32
    scf.if %2 {
      %c0_10 = arith.constant 0 : index
      %c0_11 = arith.constant 0 : index
      %12 = vector.load %arg5[%c0_10, %c0_11] : memref<1x128xf32, #tpu.memory_space<vmem>>, vector<1x128xf32>
      %13 = vector.shape_cast %12 : vector<1x128xf32> to vector<1x128xf32>
      %14 = vector.broadcast %13 : vector<1x128xf32> to vector<8x128xf32>
      %c0_12 = arith.constant 0 : index
      %c0_13 = arith.constant 0 : index
      %15 = vector.load %arg7[%c0_12, %c0_13] : memref<8x128xf32, #tpu.memory_space<vmem>>, vector<8x128xf32>
      tpu.vector_store %arg7[%c0_12, %c0_13], %14 {strides = array<i32>} : memref<8x128xf32, #tpu.memory_space<vmem>>, vector<8x128xf32>,
    } else {
    }
    %c0 = arith.constant 0 : index
    %c0_1 = arith.constant 0 : index
    %3 = vector.load %arg7[%c0, %c0_1] : memref<8x128xf32, #tpu.memory_space<vmem>>, vector<8x128xf32>
    %c0_2 = arith.constant 0 : index
    %c0_3 = arith.constant 0 : index
    %4 = vector.load %arg3[%c0_2, %c0_3] : memref<8x128xf32, #tpu.memory_space<vmem>>, vector<8x128xf32>
    %c0_4 = arith.constant 0 : index
    %c0_5 = arith.constant 0 : index
    %5 = vector.load %arg4[%c0_4, %c0_5] : memref<128x128xf32, #tpu.memory_space<vmem>>, vector<128x128xf32>
    %cst = arith.constant dense<0.000000e+00> : vector<8x128xf32>
    %6 = tpu.matmul %4, %5, %cst {dimension_numbers = #tpu.dot_dimension_numbers<[1], [0], [0], [1], [0, 0, 1, 1], [], []>} : vector<8x128xf32>, vector<128x128xf32>, vector<8x128xf32> -> vector<8x128xf32>
    %7 = arith.addf %3, %6 : vector<8x128xf32>
    %c0_6 = arith.constant 0 : index
    %c0_7 = arith.constant 0 : index
    %8 = vector.load %arg7[%c0_6, %c0_7] : memref<8x128xf32, #tpu.memory_space<vmem>>, vector<8x128xf32>
    tpu.vector_store %arg7[%c0_6, %c0_7], %7 {strides = array<i32>} : memref<8x128xf32, #tpu.memory_space<vmem>>, vector<8x128xf32>,
    %c0_i32_8 = arith.constant 0 : i32
    %9 = arith.cmpi eq, %arg2, %c0_i32_8 : i32
    %10 = arith.extui %9 : i1 to i32
    %c0_i32_9 = arith.constant 0 : i32
    %11 = arith.cmpi ne, %10, %c0_i32_9 : i32
    scf.if %11 {
      %c0_10 = arith.constant 0 : index
      %c0_11 = arith.constant 0 : index
      %12 = vector.load %arg7[%c0_10, %c0_11] : memref<8x128xf32, #tpu.memory_space<vmem>>, vector<8x128xf32>
      %c0_12 = arith.constant 0 : index
      %c0_13 = arith.constant 0 : index
      %13 = vector.load %arg6[%c0_12, %c0_13] : memref<8x128xf32, #tpu.memory_space<vmem>>, vector<8x128xf32>
      tpu.vector_store %arg6[%c0_12, %c0_13], %12 {strides = array<i32>} : memref<8x128xf32, #tpu.memory_space<vmem>>, vector<8x128xf32>,
    } else {
    }
    return
  }
  func.func @transform_0(%arg0: i32, %arg1: i32, %arg2: i32) -> (i32, i32) {
    %c0_i32 = arith.constant 0 : i32
    return %arg0, %arg2 : i32, i32
  }
  func.func @transform_1(%arg0: i32, %arg1: i32, %arg2: i32) -> (i32, i32) {
    %c0_i32 = arith.constant 0 : i32
    return %arg2, %arg1 : i32, i32
  }
  func.func @transform_2(%arg0: i32, %arg1: i32, %arg2: i32) -> (i32, i32) {
    %c0_i32 = arith.constant 0 : i32
    %c0_i32_0 = arith.constant 0 : i32
    return %c0_i32, %arg1 : i32, i32
  }
  func.func @transform_3(%arg0: i32, %arg1: i32, %arg2: i32) -> (i32, i32) {
    %c0_i32 = arith.constant 0 : i32
    return %arg0, %arg1 : i32, i32
  }
}

</mosaic_0001>

<llo_original>
// kernel: tpu_custom_call.1
$region0: #{tpu_custom_call.1}
  #allocation0 [shape = 'u32[]', space=smem, size = 0x4, offset = 0x4, fixed_abs, tag = 'smem constant byte address 0x4 - core index']
  #allocation1 [shape = 'u32[144,128]{1,0:T(1,128)}', space=vmem, size = 0x12000, scoped, tag = 'internal scratch']
  #allocation2 [shape = 'f32[8,128]{1,0:T(8,128)}', space=vmem, size = 0x1000, scoped, tag = 'scratch operand']
  %s0 = inlined_call_operand.hbm [shape: f32[8,128], index: 0, kind: input, shape index: {}]
  %s1 = inlined_call_operand.hbm [shape: f32[128,128], index: 1, kind: input, shape index: {}]
  %s2 = inlined_call_operand.hbm [shape: f32[1,128], index: 2, kind: input, shape index: {}]
  %s3 = inlined_call_operand.hbm [shape: f32[8,128], index: 3, kind: output, shape index: {}]
  %s4 = sld [smem:[#allocation0]]
  $region42: #{tpu_custom_call.1} parent=0
    _
  %s6 = ssub.s32 1, %s4
  %s7 = scalar_select 0, %s6, %s4
  $region1: #{tpu_custom_call.1} parent=0
    #allocation3 [shape = 'u8[4096]{0}', space=vmem, size = 0x1000, scoped, tag = 'input window, operand 0, single buffered']
    #allocation4 [shape = 's32[1]{0}', space=sflag, size = 0x4, scoped, tag = 'scoped memory for tpu_custom_call.1']
    #allocation5 [shape = 's32[1]{0}', space=sflag, size = 0x4, scoped, tag = 'scoped memory for tpu_custom_call.1']
    #allocation6 [shape = 'u8[65536]{0}', space=vmem, size = 0x10000, scoped, tag = 'input window, operand 1, single buffered']
    #allocation7 [shape = 's32[1]{0}', space=sflag, size = 0x4, scoped, tag = 'scoped memory for tpu_custom_call.1']
    #allocation8 [shape = 'u8[512]{0}', space=vmem, size = 0x400, scoped, tag = 'input window, operand 2, single buffered']
    #allocation9 [shape = 'u8[4096]{0}', space=vmem, size = 0x1000, scoped, tag = 'output window, operand 0, single buffered']
    %8 = vsyncpa [#allocation4], 0
    %9 = vsyncpa [#allocation7], 0
    %10 = vsyncpa [#allocation5], 0
    // Predicated region
    $region2: #{tpu_custom_call.1} parent=1 // pred_check
      _
    $region3: #{tpu_custom_call.1} parent=1 // pred_check_branch
      %12 = sbr.rel (0) target = $region5
    $region4: #{tpu_custom_call.1} parent=1 // pred_region
      %s14 = ssub.s32 128, 128
      %15 = vsyncadd [#allocation4], %s14
      %s17 = sshll.u32 [#allocation3], 4
      %s18 = int_to_ptr.vmem [resolvable:$true] %s17
      %20 = dma.hbm_to_vmem [thread:$0]  %s0, 128, %s18, [#allocation4]
    $region5: #{tpu_custom_call.1} parent=1 // pred_fallthru
      _
    // Predicated region
    $region6: #{tpu_custom_call.1} parent=1 // pred_check
      _
    $region7: #{tpu_custom_call.1} parent=1 // pred_check_branch
      %22 = sbr.rel (0) target = $region9
    $region8: #{tpu_custom_call.1} parent=1 // pred_region
      %s24 = ssub.s32 2048, 2048
      %25 = vsyncadd [#allocation7], %s24
      %s26 = sshll.u32 [#allocation6], 4
      %s27 = int_to_ptr.vmem [resolvable:$true] %s26
      %32 = dma.hbm_to_vmem [thread:$0]  %s1, 2048, %s27, [#allocation7], 128, 128, 8
    $region9: #{tpu_custom_call.1} parent=1 // pred_fallthru
      _
    // Predicated region
    $region10: #{tpu_custom_call.1} parent=1 // pred_check
      _
    $region11: #{tpu_custom_call.1} parent=1 // pred_check_branch
      %34 = sbr.rel (0) target = $region13
    $region12: #{tpu_custom_call.1} parent=1 // pred_region
      %s36 = ssub.s32 16, 16
      %37 = vsyncadd [#allocation7], %s36
      %s39 = sshll.u32 [#allocation8], 4
      %s40 = int_to_ptr.vmem [resolvable:$true] %s39
      %42 = dma.hbm_to_vmem [thread:$0]  %s2, 16, %s40, [#allocation7]
    $region13: #{tpu_custom_call.1} parent=1 // pred_fallthru
      _
    // Predicated region
    $region14: #{tpu_custom_call.1} parent=1 // pred_check
      _
    $region15: #{tpu_custom_call.1} parent=1 // pred_check_branch
      %44 = sbr.rel (0) target = $region17
    $region16: #{tpu_custom_call.1} parent=1 // pred_region
      %45 = dma.done [#allocation4], 128
    $region17: #{tpu_custom_call.1} parent=1 // pred_fallthru
      _
    // Predicated region
    $region18: #{tpu_custom_call.1} parent=1 // pred_check
      _
    $region19: #{tpu_custom_call.1} parent=1 // pred_check_branch
      %47 = sbr.rel (0) target = $region21
    $region20: #{tpu_custom_call.1} parent=1 // pred_region
      %48 = dma.done [#allocation7], 2048
    $region21: #{tpu_custom_call.1} parent=1 // pred_fallthru
      _
    // Predicated region
    $region22: #{tpu_custom_call.1} parent=1 // pred_check
      _
    $region23: #{tpu_custom_call.1} parent=1 // pred_check_branch
      %50 = sbr.rel (0) target = $region25
    $region24: #{tpu_custom_call.1} parent=1 // pred_region
      %51 = dma.done [#allocation7], 16
    $region25: #{tpu_custom_call.1} parent=1 // pred_fallthru
      _
    %p52 = scmp.eq.s32.totalorder 0, 0
    // Predicated region
    $region26: #{tpu_custom_call.1} parent=1 // pred_check
      %p53 = pneg %p52
    $region27: #{tpu_custom_call.1} parent=1 // pred_check_branch
      %55 = sbr.rel (%p53) target = $region29
    $region28: #{tpu_custom_call.1} parent=1 // pred_region
      %v56 = vld [vmem:[#allocation8] sm:$0x1]
      %v58 = vlaneseq
      %v59 = vshrl.u32 %v58, 7
      %v60 = vsub.s32 0, %v59
      %v61 = vrot.slane %v56, %v60
      %63 = vst [vmem:[#allocation2] sm:$0xff] %v61
    $region29: #{tpu_custom_call.1} parent=1 // pred_fallthru
      _
    %v64 = vld [vmem:[#allocation2] sm:$0xff]
    %v65 = vld [vmem:[#allocation3] sm:$0xff]
    %v66 = vld [vmem:[#allocation6] sm:$0xff]
    %v67 = vld [vmem:[#allocation6 + $0x8] sm:$0xff]
    %v68 = vld [vmem:[#allocation6 + $0x10] sm:$0xff]
    %v69 = vld [vmem:[#allocation6 + $0x18] sm:$0xff]
    %v70 = vld [vmem:[#allocation6 + $0x20] sm:$0xff]
    %v71 = vld [vmem:[#allocation6 + $0x28] sm:$0xff]
    %v72 = vld [vmem:[#allocation6 + $0x30] sm:$0xff]
    %v73 = vld [vmem:[#allocation6 + $0x38] sm:$0xff]
    %v74 = vld [vmem:[#allocation6 + $0x40] sm:$0xff]
    %v75 = vld [vmem:[#allocation6 + $0x48] sm:$0xff]
    %v76 = vld [vmem:[#allocation6 + $0x50] sm:$0xff]
    %v77 = vld [vmem:[#allocation6 + $0x58] sm:$0xff]
    %v78 = vld [vmem:[#allocation6 + $0x60] sm:$0xff]
    %v79 = vld [vmem:[#allocation6 + $0x68] sm:$0xff]
    %v80 = vld [vmem:[#allocation6 + $0x70] sm:$0xff]
    %v81 = vld [vmem:[#allocation6 + $0x78] sm:$0xff]
    %82 = vmatprep.subr.mxu0 0.0
    %83 = vmatpush1.msra.mxu0 %v66
    %84 = vmatprep.subr.mxu0 0.0
    %85 = vmatpush1.msra.mxu0 %v67
    %86 = vmatprep.subr.mxu0 0.0
    %87 = vmatpush1.msra.mxu0 %v68
    %88 = vmatprep.subr.mxu0 0.0
    %89 = vmatpush1.msra.mxu0 %v69
    %90 = vmatprep.subr.mxu0 0.0
    %91 = vmatpush1.msra.mxu0 %v70
    %92 = vmatprep.subr.mxu0 0.0
    %93 = vmatpush1.msra.mxu0 %v71
    %94 = vmatprep.subr.mxu0 0.0
    %95 = vmatpush1.msra.mxu0 %v72
    %96 = vmatprep.subr.mxu0 0.0
    %97 = vmatpush1.msra.mxu0 %v73
    %98 = vmatprep.subr.mxu0 0.0
    %99 = vmatpush1.msra.mxu0 %v74
    %100 = vmatprep.subr.mxu0 0.0
    %101 = vmatpush1.msra.mxu0 %v75
    %102 = vmatprep.subr.mxu0 0.0
    %103 = vmatpush1.msra.mxu0 %v76
    %104 = vmatprep.subr.mxu0 0.0
    %105 = vmatpush1.msra.mxu0 %v77
    %106 = vmatprep.subr.mxu0 0.0
    %107 = vmatpush1.msra.mxu0 %v78
    %108 = vmatprep.subr.mxu0 0.0
    %109 = vmatpush1.msra.mxu0 %v79
    %110 = vmatprep.subr.mxu0 0.0
    %111 = vmatpush1.msra.mxu0 %v80
    %112 = vmatprep.subr.mxu0 0.0
    %113 = vmatpush1.msra.mxu0 %v81
    %114 = vmatprep.subr.mxu0 0.0
    %115 = vmatpush1.msra.mxu0 0.0
    %116 = vmatprep.subr.mxu0 0.0
    %117 = vmatpush1.msra.mxu0 0.0
    %118 = vmatprep.subr.mxu0 0.0
    %119 = vmatpush1.msra.mxu0 0.0
    %120 = vmatprep.subr.mxu0 0.0
    %121 = vmatpush1.msra.mxu0 0.0
    %122 = vmatprep.subr.mxu0 0.0
    %123 = vmatpush1.msra.mxu0 0.0
    %124 = vmatprep.subr.mxu0 0.0
    %125 = vmatpush1.msra.mxu0 0.0
    %126 = vmatprep.subr.mxu0 0.0
    %127 = vmatpush1.msra.mxu0 0.0
    %128 = vmatprep.subr.mxu0 0.0
    %129 = vmatpush1.msra.mxu0 0.0
    %130 = vmatprep.subr.mxu0 0.0
    %131 = vmatpush1.msra.mxu0 0.0
    %132 = vmatprep.subr.mxu0 0.0
    %133 = vmatpush1.msra.mxu0 0.0
    %134 = vmatprep.subr.mxu0 0.0
    %135 = vmatpush1.msra.mxu0 0.0
    %136 = vmatprep.subr.mxu0 0.0
    %137 = vmatpush1.msra.mxu0 0.0
    %138 = vmatprep.subr.mxu0 0.0
    %139 = vmatpush1.msra.mxu0 0.0
    %140 = vmatprep.subr.mxu0 0.0
    %141 = vmatpush1.msra.mxu0 0.0
    %142 = vmatprep.subr.mxu0 0.0
    %143 = vmatpush1.msra.mxu0 0.0
    %144 = vmatprep.subr.mxu0 0.0
    %145 = vmatpush1.msra.mxu0 0.0
    %146 = vmatprep.mubr.f32.mxu0 0.0
    %147 = vmatmul.mubr.f32.gmra.mrb[0].mxu0 %v65
    %v148 = vpop.f32.mrb[0].mxu0
    %v149 = vadd.f32 0.0, %v148
    %v150 = vpop.f32.mrb[0].mxu0
    %151 = vdwg.mxu0
    %v152 = vadd.f32 %v64, %v149
    %153 = vst [vmem:[#allocation2] sm:$0xff] %v152
    // Predicated region
    $region30: #{tpu_custom_call.1} parent=1 // pred_check
      %p154 = pneg %p52
    $region31: #{tpu_custom_call.1} parent=1 // pred_check_branch
      %156 = sbr.rel (%p154) target = $region33
    $region32: #{tpu_custom_call.1} parent=1 // pred_region
      %v157 = vld [vmem:[#allocation2] sm:$0xff]
      %158 = vst [vmem:[#allocation9] sm:$0xff] %v157
    $region33: #{tpu_custom_call.1} parent=1 // pred_fallthru
      _
    // Predicated region
    $region34: #{tpu_custom_call.1} parent=1 // pred_check
      _
    $region35: #{tpu_custom_call.1} parent=1 // pred_check_branch
      %160 = sbr.rel (0) target = $region37
    $region36: #{tpu_custom_call.1} parent=1 // pred_region
      %s162 = ssub.s32 128, 128
      %163 = vsyncadd [#allocation5], %s162
      %s165 = sshll.u32 [#allocation9], 4
      %s166 = int_to_ptr.vmem [resolvable:$true] %s165
      %168 = dma.vmem_to_hbm [thread:$0]  %s166, 128, %s3, [#allocation5]
    $region37: #{tpu_custom_call.1} parent=1 // pred_fallthru
      _
    // Predicated region
    $region38: #{tpu_custom_call.1} parent=1 // pred_check
      _
    $region39: #{tpu_custom_call.1} parent=1 // pred_check_branch
      %170 = sbr.rel (0) target = $region41
    $region40: #{tpu_custom_call.1} parent=1 // pred_region
      %171 = dma.done [#allocation5], 128
    $region41: #{tpu_custom_call.1} parent=1 // pred_fallthru
      _
    %172 = vsyncpa [#allocation4], 1
    %173 = vsyncpa [#allocation7], 1
    %174 = vsyncpa [#allocation5], 1

</llo_original>
